<compile_context>
chip_gen: v6e
topology: v6e:2x2x1
jax: 0.10.0
libtpu: 0.0.40
codegen_flags: <defaults>
</compile_context>

<pallas_src>
import numpy as np
import jax
import jax.numpy as jnp
from jax.experimental import pallas as pl
from jax.experimental.pallas import tpu as pltpu


_PHASE_BITS = 4
_N_LEVELS = 2 ** _PHASE_BITS
_DELTA = 2.0 * np.pi / _N_LEVELS
# The 16 quantized unit directions exp(i * k * delta), k = 0..15 (covers the
# full circle; identical point set to k = -8..7 produced by torch.round).
_DIRS = tuple(
    (float(np.cos(k * _DELTA)), float(np.sin(k * _DELTA))) for k in range(_N_LEVELS)
)


def _make_mm_actv3_kernel(inv_sqrt_nt: float, p_max: float):
    """Builds the fused kernel with compile-time constants baked in."""

    def kernel(rf_re_ref, rf_im_ref, p_ref, rf_re_out, rf_im_out, p_out):
        # ---------------- P branch: grid-resident output, done once ----------
        @pl.when(pl.program_id(0) == 0)
        def _():
            p = p_ref[...]
            p = 1.0 / (1.0 + jnp.exp(-p))                    # sigmoid (EUP exp)
            row = jnp.sum(p, axis=1, keepdims=True)          # sum over users
            scale = jnp.maximum(jnp.ones_like(row), row)     # max(1, row_sums)
            p_out[...] = (p / scale) * p_max

        # ---------------- RF branch: elementwise on the current row-tile -----
        re = rf_re_ref[...]
        im = rf_im_ref[...]

        # Constant-modulus normalization: RF / |RF| * sqrt(1/Nt)
        mag = jnp.sqrt(re * re + im * im)
        inv = 1.0 / mag
        re_n = re * inv * inv_sqrt_nt
        im_n = im * inv * inv_sqrt_nt
        # Faithful to quantize_phase: magnitude = |normalized RF| (~= 1/sqrt(Nt))
        mag_n = jnp.sqrt(re_n * re_n + im_n * im_n)

        # 4-bit phase quantization = snap to the nearest of 16 unit directions
        # (equivalent to magnitude * exp(i*round(angle/delta)*delta)).
        # Only mul/add/cmp/select -> pure VPU work, no transcendental risk.
        c0, s0 = _DIRS[0]
        best = re_n * c0 + im_n * s0
        q_re = jnp.full_like(re_n, c0)
        q_im = jnp.full_like(im_n, s0)
        for ck, sk in _DIRS[1:]:
            d = re_n * ck + im_n * sk
            take = d > best
            best = jnp.where(take, d, best)
            q_re = jnp.where(take, ck, q_re)
            q_im = jnp.where(take, sk, q_im)

        rf_re_out[...] = mag_n * q_re
        rf_im_out[...] = mag_n * q_im

    return kernel


def mm_actv3_forward(RF, BB, P, *, user_num, antenna_num, p_max):
    """JAX/Pallas equivalent of MM_ACTv3.forward. Returns (RF_q, BB, P_scaled)."""
    K, Nt = int(user_num), int(antenna_num)

    rf_re = jnp.real(RF).astype(jnp.float32)
    rf_im = jnp.imag(RF).astype(jnp.float32)
    P = P.astype(jnp.float32)

    total = rf_re.size
    assert total % (K * Nt) == 0, "RF must reshape to (-1, K, Nt)"
    assert P.ndim == 2, "P expected as (batch, users)"

    # Lane-dense 2-D layout for the elementwise RF work: last dim a multiple of
    # 128 whenever possible so output stores are full-width (unmasked) vst.
    if total % 128 == 0:
        cols = 128
    else:
        cols = total  # fallback: single full-array row (still legal BlockSpec)
    rows = total // cols
    rf_re2 = rf_re.reshape(rows, cols)
    rf_im2 = rf_im.reshape(rows, cols)

    # Row tile: biggest sensible tile (multiple of 8, or the full row count) so
    # per-grid-step overhead amortizes; double-buffered VMEM stays tiny.
    tm = rows if rows <= 512 else 512
    grid = (pl.cdiv(rows, tm),)

    rf_spec = pl.BlockSpec((tm, cols), lambda i: (i, 0))
    p_spec = pl.BlockSpec(P.shape, lambda i: (0, 0))  # resident across the grid

    kernel = _make_mm_actv3_kernel(float(np.sqrt(1.0 / Nt)), float(p_max))

    cost = pl.CostEstimate(
        flops=int(120 * total + 12 * P.size),
        transcendentals=int(2 * total + P.size),
        bytes_accessed=int(4 * (4 * total + 2 * P.size)),
    )

    rf_re_q, rf_im_q, p_out = pl.pallas_call(
        kernel,
        out_shape=(
            jax.ShapeDtypeStruct((rows, cols), jnp.float32),
            jax.ShapeDtypeStruct((rows, cols), jnp.float32),
            jax.ShapeDtypeStruct(P.shape, jnp.float32),
        ),
        grid=grid,
        in_specs=[rf_spec, rf_spec, p_spec],
        out_specs=(rf_spec, rf_spec, p_spec),
        compiler_params=pltpu.CompilerParams(
            # P's output block index is constant across the grid axis
            # (accumulator-style residency), so the axis must be "arbitrary".
            dimension_semantics=("arbitrary",),
        ),
        cost_estimate=cost,
    )(rf_re2, rf_im2, P)

    # Cheap layout glue outside the kernel (elementwise math commutes with it):
    # reshape(-1, K, Nt) -> transpose(1, 2) -> complex64.
    rf_re_q = rf_re_q.reshape(-1, K, Nt)
    rf_im_q = rf_im_q.reshape(-1, K, Nt)
    RF_out = jax.lax.complex(
        jnp.swapaxes(rf_re_q, 1, 2), jnp.swapaxes(rf_im_q, 1, 2)
    )
    return RF_out, BB, p_out


if __name__ == "__main__":
    # args of MM_ACTv3
    user_num = 4       # K
    antenna_num = 16   # Nt
    p_max = 1.0
    B = 2              # batch

    K, Nt = user_num, antenna_num

    key = jax.random.PRNGKey(0)
    k_re, k_im, k_bbr, k_bbi, k_p = jax.random.split(key, 5)

    # RF: complex analog precoder, B*K*Nt elements (flattened per batch row).
    RF = jax.lax.complex(
        jax.random.normal(k_re, (B, K * Nt), dtype=jnp.float32),
        jax.random.normal(k_im, (B, K * Nt), dtype=jnp.float32),
    )
    # BB: digital precoder, passed through untouched.
    BB = jax.lax.complex(
        jax.random.normal(k_bbr, (B, K, K), dtype=jnp.float32),
        jax.random.normal(k_bbi, (B, K, K), dtype=jnp.float32),
    )
    # P: per-user power logits.
    P = jax.random.normal(k_p, (B, K), dtype=jnp.float32)

    RF_out, BB_out, P_out = mm_actv3_forward(
        RF, BB, P, user_num=K, antenna_num=Nt, p_max=p_max
    )
    RF_out, BB_out, P_out = jax.block_until_ready((RF_out, BB_out, P_out))

    # ---- plain-JAX reference (same math as the torch module) ----
    P_ref = jax.nn.sigmoid(P)
    row = jnp.sum(P_ref, axis=1, keepdims=True)
    P_ref = P_ref / jnp.maximum(jnp.ones_like(row), row) * p_max

    RF_n = RF / jnp.abs(RF) * jnp.sqrt(1.0 / Nt)
    RF_n = RF_n.reshape(-1, K, Nt)
    RF_n = jnp.swapaxes(RF_n, 1, 2)
    delta = 2.0 * jnp.pi / (2 ** 4)
    phase_q = jnp.round(jnp.angle(RF_n) / delta) * delta
    RF_ref = jnp.abs(RF_n) * jnp.exp(1j * phase_q)

    assert RF_out.shape == (B, Nt, K) and RF_out.dtype == jnp.complex64
    assert P_out.shape == (B, K)
    assert jnp.allclose(RF_out, RF_ref, atol=1e-5, rtol=1e-5)
    assert jnp.allclose(P_out, P_ref, atol=1e-6, rtol=1e-6)
    assert jnp.array_equal(BB_out, BB)

    print("KERNEL_OK")
</pallas_src>

<mosaic_0001>
module attributes {stable_mosaic.version = 11 : i64} {
  func.func @kernel(%arg0: i32, %arg1: memref<1x128xf32, #tpu.memory_space<vmem>>, %arg2: memref<1x128xf32, #tpu.memory_space<vmem>>, %arg3: memref<2x4xf32, #tpu.memory_space<vmem>>, %arg4: memref<1x128xf32, #tpu.memory_space<vmem>>, %arg5: memref<1x128xf32, #tpu.memory_space<vmem>>, %arg6: memref<2x4xf32, #tpu.memory_space<vmem>>) attributes {dimension_semantics = [#tpu.dimension_semantics<arbitrary>], iteration_bounds = array<i64: 1>, scalar_prefetch = 0 : i64, scratch_operands = 0 : i64, tpu.core_type = #tpu.core_type<tc>, window_params = [{transform_indices = @transform_0, window_bounds = array<i64: 1, 128>}, {transform_indices = @transform_1, window_bounds = array<i64: 1, 128>}, {pipeline_mode = #tpu.pipeline_mode<synchronous>, transform_indices = @transform_2, window_bounds = array<i64: 2, 4>}, {transform_indices = @transform_3, window_bounds = array<i64: 1, 128>}, {transform_indices = @transform_4, window_bounds = array<i64: 1, 128>}, {pipeline_mode = #tpu.pipeline_mode<synchronous>, transform_indices = @transform_5, window_bounds = array<i64: 2, 4>}]} {
    %c0_i32 = arith.constant 0 : i32
    %0 = arith.cmpi eq, %arg0, %c0_i32 : i32
    %1 = arith.extui %0 : i1 to i32
    %c0_i32_0 = arith.constant 0 : i32
    %2 = arith.cmpi ne, %1, %c0_i32_0 : i32
    scf.if %2 {
      %c0_74 = arith.constant 0 : index
      %c0_75 = arith.constant 0 : index
      %196 = vector.load %arg3[%c0_74, %c0_75] : memref<2x4xf32, #tpu.memory_space<vmem>>, vector<2x4xf32>
      %cst_76 = arith.constant 0.000000e+00 : f32
      %197 = vector.broadcast %cst_76 : f32 to vector<2x4xf32>
      %198 = arith.subf %197, %196 : vector<2x4xf32>
      %199 = math.exp %198 : vector<2x4xf32>
      %cst_77 = arith.constant 1.000000e+00 : f32
      %200 = vector.broadcast %cst_77 : f32 to vector<2x4xf32>
      %201 = arith.addf %200, %199 : vector<2x4xf32>
      %cst_78 = arith.constant 1.000000e+00 : f32
      %202 = vector.broadcast %cst_78 : f32 to vector<2x4xf32>
      %203 = arith.divf %202, %201 : vector<2x4xf32>
      %cst_79 = arith.constant dense<0.000000e+00> : vector<2xf32>
      %204 = vector.multi_reduction <add>, %203, %cst_79 [1] : vector<2x4xf32> to vector<2xf32>
      %205 = vector.shape_cast %204 : vector<2xf32> to vector<2x1xf32>
      %cst_80 = arith.constant 1.000000e+00 : f32
      %206 = vector.broadcast %cst_80 : f32 to vector<2x1xf32>
      %207 = arith.maximumf %206, %205 : vector<2x1xf32>
      %208 = vector.broadcast %207 : vector<2x1xf32> to vector<2x4xf32>
      %209 = arith.divf %203, %208 : vector<2x4xf32>
      %cst_81 = arith.constant 1.000000e+00 : f32
      %210 = vector.broadcast %cst_81 : f32 to vector<2x4xf32>
      %211 = arith.mulf %209, %210 : vector<2x4xf32>
      %c0_82 = arith.constant 0 : index
      %c0_83 = arith.constant 0 : index
      %212 = vector.load %arg6[%c0_82, %c0_83] : memref<2x4xf32, #tpu.memory_space<vmem>>, vector<2x4xf32>
      tpu.vector_store %arg6[%c0_82, %c0_83], %211 {strides = array<i32>} : memref<2x4xf32, #tpu.memory_space<vmem>>, vector<2x4xf32>,
    } else {
    }
    %c0 = arith.constant 0 : index
    %c0_1 = arith.constant 0 : index
    %3 = vector.load %arg1[%c0, %c0_1] : memref<1x128xf32, #tpu.memory_space<vmem>>, vector<1x128xf32>
    %c0_2 = arith.constant 0 : index
    %c0_3 = arith.constant 0 : index
    %4 = vector.load %arg2[%c0_2, %c0_3] : memref<1x128xf32, #tpu.memory_space<vmem>>, vector<1x128xf32>
    %5 = arith.mulf %3, %3 : vector<1x128xf32>
    %6 = arith.mulf %4, %4 : vector<1x128xf32>
    %7 = arith.addf %5, %6 : vector<1x128xf32>
    %8 = math.sqrt %7 : vector<1x128xf32>
    %cst = arith.constant 1.000000e+00 : f32
    %9 = vector.broadcast %cst : f32 to vector<1x128xf32>
    %10 = arith.divf %9, %8 : vector<1x128xf32>
    %11 = arith.mulf %3, %10 : vector<1x128xf32>
    %cst_4 = arith.constant 2.500000e-01 : f32
    %12 = vector.broadcast %cst_4 : f32 to vector<1x128xf32>
    %13 = arith.mulf %11, %12 : vector<1x128xf32>
    %14 = arith.mulf %4, %10 : vector<1x128xf32>
    %cst_5 = arith.constant 2.500000e-01 : f32
    %15 = vector.broadcast %cst_5 : f32 to vector<1x128xf32>
    %16 = arith.mulf %14, %15 : vector<1x128xf32>
    %17 = arith.mulf %13, %13 : vector<1x128xf32>
    %18 = arith.mulf %16, %16 : vector<1x128xf32>
    %19 = arith.addf %17, %18 : vector<1x128xf32>
    %20 = math.sqrt %19 : vector<1x128xf32>
    %cst_6 = arith.constant 1.000000e+00 : f32
    %21 = vector.broadcast %cst_6 : f32 to vector<1x128xf32>
    %22 = arith.mulf %13, %21 : vector<1x128xf32>
    %cst_7 = arith.constant 0.000000e+00 : f32
    %23 = vector.broadcast %cst_7 : f32 to vector<1x128xf32>
    %24 = arith.mulf %16, %23 : vector<1x128xf32>
    %25 = arith.addf %22, %24 : vector<1x128xf32>
    %cst_8 = arith.constant 1.000000e+00 : f32
    %26 = vector.broadcast %cst_8 : f32 to vector<1x128xf32>
    %cst_9 = arith.constant 0.000000e+00 : f32
    %27 = vector.broadcast %cst_9 : f32 to vector<1x128xf32>
    %cst_10 = arith.constant 0.923879504 : f32
    %28 = vector.broadcast %cst_10 : f32 to vector<1x128xf32>
    %29 = arith.mulf %13, %28 : vector<1x128xf32>
    %cst_11 = arith.constant 0.382683426 : f32
    %30 = vector.broadcast %cst_11 : f32 to vector<1x128xf32>
    %31 = arith.mulf %16, %30 : vector<1x128xf32>
    %32 = arith.addf %29, %31 : vector<1x128xf32>
    %33 = arith.cmpf ogt, %32, %25 : vector<1x128xf32>
    %34 = arith.select %33, %32, %25 : vector<1x128xi1>, vector<1x128xf32>
    %cst_12 = arith.constant 0.923879504 : f32
    %35 = vector.broadcast %cst_12 : f32 to vector<1x128xf32>
    %36 = arith.select %33, %35, %26 : vector<1x128xi1>, vector<1x128xf32>
    %cst_13 = arith.constant 0.382683426 : f32
    %37 = vector.broadcast %cst_13 : f32 to vector<1x128xf32>
    %38 = arith.select %33, %37, %27 : vector<1x128xi1>, vector<1x128xf32>
    %cst_14 = arith.constant 0.707106769 : f32
    %39 = vector.broadcast %cst_14 : f32 to vector<1x128xf32>
    %40 = arith.mulf %13, %39 : vector<1x128xf32>
    %cst_15 = arith.constant 0.707106769 : f32
    %41 = vector.broadcast %cst_15 : f32 to vector<1x128xf32>
    %42 = arith.mulf %16, %41 : vector<1x128xf32>
    %43 = arith.addf %40, %42 : vector<1x128xf32>
    %44 = arith.cmpf ogt, %43, %34 : vector<1x128xf32>
    %45 = arith.select %44, %43, %34 : vector<1x128xi1>, vector<1x128xf32>
    %cst_16 = arith.constant 0.707106769 : f32
    %46 = vector.broadcast %cst_16 : f32 to vector<1x128xf32>
    %47 = arith.select %44, %46, %36 : vector<1x128xi1>, vector<1x128xf32>
    %cst_17 = arith.constant 0.707106769 : f32
    %48 = vector.broadcast %cst_17 : f32 to vector<1x128xf32>
    %49 = arith.select %44, %48, %38 : vector<1x128xi1>, vector<1x128xf32>
    %cst_18 = arith.constant 0.382683426 : f32
    %50 = vector.broadcast %cst_18 : f32 to vector<1x128xf32>
    %51 = arith.mulf %13, %50 : vector<1x128xf32>
    %cst_19 = arith.constant 0.923879504 : f32
    %52 = vector.broadcast %cst_19 : f32 to vector<1x128xf32>
    %53 = arith.mulf %16, %52 : vector<1x128xf32>
    %54 = arith.addf %51, %53 : vector<1x128xf32>
    %55 = arith.cmpf ogt, %54, %45 : vector<1x128xf32>
    %56 = arith.select %55, %54, %45 : vector<1x128xi1>, vector<1x128xf32>
    %cst_20 = arith.constant 0.382683426 : f32
    %57 = vector.broadcast %cst_20 : f32 to vector<1x128xf32>
    %58 = arith.select %55, %57, %47 : vector<1x128xi1>, vector<1x128xf32>
    %cst_21 = arith.constant 0.923879504 : f32
    %59 = vector.broadcast %cst_21 : f32 to vector<1x128xf32>
    %60 = arith.select %55, %59, %49 : vector<1x128xi1>, vector<1x128xf32>
    %cst_22 = arith.constant 6.12323426E-17 : f32
    %61 = vector.broadcast %cst_22 : f32 to vector<1x128xf32>
    %62 = arith.mulf %13, %61 : vector<1x128xf32>
    %cst_23 = arith.constant 1.000000e+00 : f32
    %63 = vector.broadcast %cst_23 : f32 to vector<1x128xf32>
    %64 = arith.mulf %16, %63 : vector<1x128xf32>
    %65 = arith.addf %62, %64 : vector<1x128xf32>
    %66 = arith.cmpf ogt, %65, %56 : vector<1x128xf32>
    %67 = arith.select %66, %65, %56 : vector<1x128xi1>, vector<1x128xf32>
    %cst_24 = arith.constant 6.12323426E-17 : f32
    %68 = vector.broadcast %cst_24 : f32 to vector<1x128xf32>
    %69 = arith.select %66, %68, %58 : vector<1x128xi1>, vector<1x128xf32>
    %cst_25 = arith.constant 1.000000e+00 : f32
    %70 = vector.broadcast %cst_25 : f32 to vector<1x128xf32>
    %71 = arith.select %66, %70, %60 : vector<1x128xi1>, vector<1x128xf32>
    %cst_26 = arith.constant -0.382683426 : f32
    %72 = vector.broadcast %cst_26 : f32 to vector<1x128xf32>
    %73 = arith.mulf %13, %72 : vector<1x128xf32>
    %cst_27 = arith.constant 0.923879504 : f32
    %74 = vector.broadcast %cst_27 : f32 to vector<1x128xf32>
    %75 = arith.mulf %16, %74 : vector<1x128xf32>
    %76 = arith.addf %73, %75 : vector<1x128xf32>
    %77 = arith.cmpf ogt, %76, %67 : vector<1x128xf32>
    %78 = arith.select %77, %76, %67 : vector<1x128xi1>, vector<1x128xf32>
    %cst_28 = arith.constant -0.382683426 : f32
    %79 = vector.broadcast %cst_28 : f32 to vector<1x128xf32>
    %80 = arith.select %77, %79, %69 : vector<1x128xi1>, vector<1x128xf32>
    %cst_29 = arith.constant 0.923879504 : f32
    %81 = vector.broadcast %cst_29 : f32 to vector<1x128xf32>
    %82 = arith.select %77, %81, %71 : vector<1x128xi1>, vector<1x128xf32>
    %cst_30 = arith.constant -0.707106769 : f32
    %83 = vector.broadcast %cst_30 : f32 to vector<1x128xf32>
    %84 = arith.mulf %13, %83 : vector<1x128xf32>
    %cst_31 = arith.constant 0.707106769 : f32
    %85 = vector.broadcast %cst_31 : f32 to vector<1x128xf32>
    %86 = arith.mulf %16, %85 : vector<1x128xf32>
    %87 = arith.addf %84, %86 : vector<1x128xf32>
    %88 = arith.cmpf ogt, %87, %78 : vector<1x128xf32>
    %89 = arith.select %88, %87, %78 : vector<1x128xi1>, vector<1x128xf32>
    %cst_32 = arith.constant -0.707106769 : f32
    %90 = vector.broadcast %cst_32 : f32 to vector<1x128xf32>
    %91 = arith.select %88, %90, %80 : vector<1x128xi1>, vector<1x128xf32>
    %cst_33 = arith.constant 0.707106769 : f32
    %92 = vector.broadcast %cst_33 : f32 to vector<1x128xf32>
    %93 = arith.select %88, %92, %82 : vector<1x128xi1>, vector<1x128xf32>
    %cst_34 = arith.constant -0.923879504 : f32
    %94 = vector.broadcast %cst_34 : f32 to vector<1x128xf32>
    %95 = arith.mulf %13, %94 : vector<1x128xf32>
    %cst_35 = arith.constant 0.382683426 : f32
    %96 = vector.broadcast %cst_35 : f32 to vector<1x128xf32>
    %97 = arith.mulf %16, %96 : vector<1x128xf32>
    %98 = arith.addf %95, %97 : vector<1x128xf32>
    %99 = arith.cmpf ogt, %98, %89 : vector<1x128xf32>
    %100 = arith.select %99, %98, %89 : vector<1x128xi1>, vector<1x128xf32>
    %cst_36 = arith.constant -0.923879504 : f32
    %101 = vector.broadcast %cst_36 : f32 to vector<1x128xf32>
    %102 = arith.select %99, %101, %91 : vector<1x128xi1>, vector<1x128xf32>
    %cst_37 = arith.constant 0.382683426 : f32
    %103 = vector.broadcast %cst_37 : f32 to vector<1x128xf32>
    %104 = arith.select %99, %103, %93 : vector<1x128xi1>, vector<1x128xf32>
    %cst_38 = arith.constant -1.000000e+00 : f32
    %105 = vector.broadcast %cst_38 : f32 to vector<1x128xf32>
    %106 = arith.mulf %13, %105 : vector<1x128xf32>
    %cst_39 = arith.constant 1.22464685E-16 : f32
    %107 = vector.broadcast %cst_39 : f32 to vector<1x128xf32>
    %108 = arith.mulf %16, %107 : vector<1x128xf32>
    %109 = arith.addf %106, %108 : vector<1x128xf32>
    %110 = arith.cmpf ogt, %109, %100 : vector<1x128xf32>
    %111 = arith.select %110, %109, %100 : vector<1x128xi1>, vector<1x128xf32>
    %cst_40 = arith.constant -1.000000e+00 : f32
    %112 = vector.broadcast %cst_40 : f32 to vector<1x128xf32>
    %113 = arith.select %110, %112, %102 : vector<1x128xi1>, vector<1x128xf32>
    %cst_41 = arith.constant 1.22464685E-16 : f32
    %114 = vector.broadcast %cst_41 : f32 to vector<1x128xf32>
    %115 = arith.select %110, %114, %104 : vector<1x128xi1>, vector<1x128xf32>
    %cst_42 = arith.constant -0.923879504 : f32
    %116 = vector.broadcast %cst_42 : f32 to vector<1x128xf32>
    %117 = arith.mulf %13, %116 : vector<1x128xf32>
    %cst_43 = arith.constant -0.382683426 : f32
    %118 = vector.broadcast %cst_43 : f32 to vector<1x128xf32>
    %119 = arith.mulf %16, %118 : vector<1x128xf32>
    %120 = arith.addf %117, %119 : vector<1x128xf32>
    %121 = arith.cmpf ogt, %120, %111 : vector<1x128xf32>
    %122 = arith.select %121, %120, %111 : vector<1x128xi1>, vector<1x128xf32>
    %cst_44 = arith.constant -0.923879504 : f32
    %123 = vector.broadcast %cst_44 : f32 to vector<1x128xf32>
    %124 = arith.select %121, %123, %113 : vector<1x128xi1>, vector<1x128xf32>
    %cst_45 = arith.constant -0.382683426 : f32
    %125 = vector.broadcast %cst_45 : f32 to vector<1x128xf32>
    %126 = arith.select %121, %125, %115 : vector<1x128xi1>, vector<1x128xf32>
    %cst_46 = arith.constant -0.707106769 : f32
    %127 = vector.broadcast %cst_46 : f32 to vector<1x128xf32>
    %128 = arith.mulf %13, %127 : vector<1x128xf32>
    %cst_47 = arith.constant -0.707106769 : f32
    %129 = vector.broadcast %cst_47 : f32 to vector<1x128xf32>
    %130 = arith.mulf %16, %129 : vector<1x128xf32>
    %131 = arith.addf %128, %130 : vector<1x128xf32>
    %132 = arith.cmpf ogt, %131, %122 : vector<1x128xf32>
    %133 = arith.select %132, %131, %122 : vector<1x128xi1>, vector<1x128xf32>
    %cst_48 = arith.constant -0.707106769 : f32
    %134 = vector.broadcast %cst_48 : f32 to vector<1x128xf32>
    %135 = arith.select %132, %134, %124 : vector<1x128xi1>, vector<1x128xf32>
    %cst_49 = arith.constant -0.707106769 : f32
    %136 = vector.broadcast %cst_49 : f32 to vector<1x128xf32>
    %137 = arith.select %132, %136, %126 : vector<1x128xi1>, vector<1x128xf32>
    %cst_50 = arith.constant -0.382683426 : f32
    %138 = vector.broadcast %cst_50 : f32 to vector<1x128xf32>
    %139 = arith.mulf %13, %138 : vector<1x128xf32>
    %cst_51 = arith.constant -0.923879504 : f32
    %140 = vector.broadcast %cst_51 : f32 to vector<1x128xf32>
    %141 = arith.mulf %16, %140 : vector<1x128xf32>
    %142 = arith.addf %139, %141 : vector<1x128xf32>
    %143 = arith.cmpf ogt, %142, %133 : vector<1x128xf32>
    %144 = arith.select %143, %142, %133 : vector<1x128xi1>, vector<1x128xf32>
    %cst_52 = arith.constant -0.382683426 : f32
    %145 = vector.broadcast %cst_52 : f32 to vector<1x128xf32>
    %146 = arith.select %143, %145, %135 : vector<1x128xi1>, vector<1x128xf32>
    %cst_53 = arith.constant -0.923879504 : f32
    %147 = vector.broadcast %cst_53 : f32 to vector<1x128xf32>
    %148 = arith.select %143, %147, %137 : vector<1x128xi1>, vector<1x128xf32>
    %cst_54 = arith.constant -1.83697015E-16 : f32
    %149 = vector.broadcast %cst_54 : f32 to vector<1x128xf32>
    %150 = arith.mulf %13, %149 : vector<1x128xf32>
    %cst_55 = arith.constant -1.000000e+00 : f32
    %151 = vector.broadcast %cst_55 : f32 to vector<1x128xf32>
    %152 = arith.mulf %16, %151 : vector<1x128xf32>
    %153 = arith.addf %150, %152 : vector<1x128xf32>
    %154 = arith.cmpf ogt, %153, %144 : vector<1x128xf32>
    %155 = arith.select %154, %153, %144 : vector<1x128xi1>, vector<1x128xf32>
    %cst_56 = arith.constant -1.83697015E-16 : f32
    %156 = vector.broadcast %cst_56 : f32 to vector<1x128xf32>
    %157 = arith.select %154, %156, %146 : vector<1x128xi1>, vector<1x128xf32>
    %cst_57 = arith.constant -1.000000e+00 : f32
    %158 = vector.broadcast %cst_57 : f32 to vector<1x128xf32>
    %159 = arith.select %154, %158, %148 : vector<1x128xi1>, vector<1x128xf32>
    %cst_58 = arith.constant 0.382683426 : f32
    %160 = vector.broadcast %cst_58 : f32 to vector<1x128xf32>
    %161 = arith.mulf %13, %160 : vector<1x128xf32>
    %cst_59 = arith.constant -0.923879504 : f32
    %162 = vector.broadcast %cst_59 : f32 to vector<1x128xf32>
    %163 = arith.mulf %16, %162 : vector<1x128xf32>
    %164 = arith.addf %161, %163 : vector<1x128xf32>
    %165 = arith.cmpf ogt, %164, %155 : vector<1x128xf32>
    %166 = arith.select %165, %164, %155 : vector<1x128xi1>, vector<1x128xf32>
    %cst_60 = arith.constant 0.382683426 : f32
    %167 = vector.broadcast %cst_60 : f32 to vector<1x128xf32>
    %168 = arith.select %165, %167, %157 : vector<1x128xi1>, vector<1x128xf32>
    %cst_61 = arith.constant -0.923879504 : f32
    %169 = vector.broadcast %cst_61 : f32 to vector<1x128xf32>
    %170 = arith.select %165, %169, %159 : vector<1x128xi1>, vector<1x128xf32>
    %cst_62 = arith.constant 0.707106769 : f32
    %171 = vector.broadcast %cst_62 : f32 to vector<1x128xf32>
    %172 = arith.mulf %13, %171 : vector<1x128xf32>
    %cst_63 = arith.constant -0.707106769 : f32
    %173 = vector.broadcast %cst_63 : f32 to vector<1x128xf32>
    %174 = arith.mulf %16, %173 : vector<1x128xf32>
    %175 = arith.addf %172, %174 : vector<1x128xf32>
    %176 = arith.cmpf ogt, %175, %166 : vector<1x128xf32>
    %177 = arith.select %176, %175, %166 : vector<1x128xi1>, vector<1x128xf32>
    %cst_64 = arith.constant 0.707106769 : f32
    %178 = vector.broadcast %cst_64 : f32 to vector<1x128xf32>
    %179 = arith.select %176, %178, %168 : vector<1x128xi1>, vector<1x128xf32>
    %cst_65 = arith.constant -0.707106769 : f32
    %180 = vector.broadcast %cst_65 : f32 to vector<1x128xf32>
    %181 = arith.select %176, %180, %170 : vector<1x128xi1>, vector<1x128xf32>
    %cst_66 = arith.constant 0.923879504 : f32
    %182 = vector.broadcast %cst_66 : f32 to vector<1x128xf32>
    %183 = arith.mulf %13, %182 : vector<1x128xf32>
    %cst_67 = arith.constant -0.382683426 : f32
    %184 = vector.broadcast %cst_67 : f32 to vector<1x128xf32>
    %185 = arith.mulf %16, %184 : vector<1x128xf32>
    %186 = arith.addf %183, %185 : vector<1x128xf32>
    %187 = arith.cmpf ogt, %186, %177 : vector<1x128xf32>
    %cst_68 = arith.constant 0.923879504 : f32
    %188 = vector.broadcast %cst_68 : f32 to vector<1x128xf32>
    %189 = arith.select %187, %188, %179 : vector<1x128xi1>, vector<1x128xf32>
    %cst_69 = arith.constant -0.382683426 : f32
    %190 = vector.broadcast %cst_69 : f32 to vector<1x128xf32>
    %191 = arith.select %187, %190, %181 : vector<1x128xi1>, vector<1x128xf32>
    %192 = arith.mulf %20, %189 : vector<1x128xf32>
    %c0_70 = arith.constant 0 : index
    %c0_71 = arith.constant 0 : index
    %193 = vector.load %arg4[%c0_70, %c0_71] : memref<1x128xf32, #tpu.memory_space<vmem>>, vector<1x128xf32>
    tpu.vector_store %arg4[%c0_70, %c0_71], %192 {strides = array<i32>} : memref<1x128xf32, #tpu.memory_space<vmem>>, vector<1x128xf32>,
    %194 = arith.mulf %20, %191 : vector<1x128xf32>
    %c0_72 = arith.constant 0 : index
    %c0_73 = arith.constant 0 : index
    %195 = vector.load %arg5[%c0_72, %c0_73] : memref<1x128xf32, #tpu.memory_space<vmem>>, vector<1x128xf32>
    tpu.vector_store %arg5[%c0_72, %c0_73], %194 {strides = array<i32>} : memref<1x128xf32, #tpu.memory_space<vmem>>, vector<1x128xf32>,
    return
  }
  func.func @transform_0(%arg0: i32) -> (i32, i32) {
    %c0_i32 = arith.constant 0 : i32
    %c0_i32_0 = arith.constant 0 : i32
    return %arg0, %c0_i32 : i32, i32
  }
  func.func @transform_1(%arg0: i32) -> (i32, i32) {
    %c0_i32 = arith.constant 0 : i32
    %c0_i32_0 = arith.constant 0 : i32
    return %arg0, %c0_i32 : i32, i32
  }
  func.func @transform_2(%arg0: i32) -> (i32, i32) {
    %c0_i32 = arith.constant 0 : i32
    %c0_i32_0 = arith.constant 0 : i32
    %c0_i32_1 = arith.constant 0 : i32
    return %c0_i32, %c0_i32_0 : i32, i32
  }
  func.func @transform_3(%arg0: i32) -> (i32, i32) {
    %c0_i32 = arith.constant 0 : i32
    %c0_i32_0 = arith.constant 0 : i32
    return %arg0, %c0_i32 : i32, i32
  }
  func.func @transform_4(%arg0: i32) -> (i32, i32) {
    %c0_i32 = arith.constant 0 : i32
    %c0_i32_0 = arith.constant 0 : i32
    return %arg0, %c0_i32 : i32, i32
  }
  func.func @transform_5(%arg0: i32) -> (i32, i32) {
    %c0_i32 = arith.constant 0 : i32
    %c0_i32_0 = arith.constant 0 : i32
    %c0_i32_1 = arith.constant 0 : i32
    return %c0_i32, %c0_i32_0 : i32, i32
  }
}

</mosaic_0001>

<llo_original>
// kernel: tpu_custom_call.1
$region0: #{tpu_custom_call.1}
  #allocation0 [shape = 'u32[]', space=smem, size = 0x4, offset = 0x4, fixed_abs, tag = 'smem constant byte address 0x4 - core index']
  #allocation1 [shape = 'u32[144,128]{1,0:T(1,128)}', space=vmem, size = 0x12000, scoped, tag = 'internal scratch']
  %s0 = inlined_call_operand.hbm [shape: f32[1,128], index: 0, kind: input, shape index: {}]
  %s1 = inlined_call_operand.vmem [shape: f32[1,128], index: 1, kind: input, shape index: {}]
  %s2 = inlined_call_operand.vmem [shape: f32[2,4], index: 2, kind: input, shape index: {}]
  %s3 = inlined_call_operand.hbm [shape: f32[1,128], index: 3, kind: output, shape index: {0}]
  %s4 = inlined_call_operand.hbm [shape: f32[1,128], index: 4, kind: output, shape index: {1}]
  %s5 = inlined_call_operand.hbm [shape: f32[2,4], index: 5, kind: output, shape index: {2}]
  %6 = xla_tuple %s3, %s4, %s5
  %s7 = sld [smem:[#allocation0]]
  $region46: #{tpu_custom_call.1} parent=0
    _
  %s9 = ssub.s32 1, %s7
  %s10 = scalar_select 0, %s9, %s7
  $region1: #{tpu_custom_call.1} parent=0
    #allocation2 [shape = 'u8[512]{0}', space=vmem, size = 0x400, scoped, tag = 'input window, operand 0, single buffered']
    #allocation3 [shape = 's32[1]{0}', space=sflag, size = 0x4, scoped, tag = 'scoped memory for tpu_custom_call.1']
    #allocation4 [shape = 's32[1]{0}', space=sflag, size = 0x4, scoped, tag = 'scoped memory for tpu_custom_call.1']
    #allocation5 [shape = 'u8[512]{0}', space=vmem, size = 0x400, scoped, tag = 'output window, operand 0, single buffered']
    #allocation6 [shape = 'u8[512]{0}', space=vmem, size = 0x400, scoped, tag = 'output window, operand 1, single buffered']
    #allocation7 [shape = 's32[1]{0}', space=sflag, size = 0x4, scoped, tag = 'scoped memory for tpu_custom_call.1']
    #allocation8 [shape = 'u8[1024]{0}', space=vmem, size = 0x400, scoped, tag = 'output window, operand 2, single buffered']
    %11 = vsyncpa [#allocation3], 0
    %12 = vsyncpa [#allocation4], 0
    %13 = vsyncpa [#allocation7], 0
    // Predicated region
    $region2: #{tpu_custom_call.1} parent=1 // pred_check
      _
    $region3: #{tpu_custom_call.1} parent=1 // pred_check_branch
      %15 = sbr.rel (0) target = $region5
    $region4: #{tpu_custom_call.1} parent=1 // pred_region
      %s17 = ssub.s32 16, 16
      %18 = vsyncadd [#allocation3], %s17
      %s20 = sshll.u32 [#allocation2], 4
      %s21 = int_to_ptr.vmem [resolvable:$true] %s20
      %23 = dma.hbm_to_vmem [thread:$0]  %s0, 16, %s21, [#allocation3]
    $region5: #{tpu_custom_call.1} parent=1 // pred_fallthru
      _
    // Predicated region
    $region6: #{tpu_custom_call.1} parent=1 // pred_check
      _
    $region7: #{tpu_custom_call.1} parent=1 // pred_check_branch
      %25 = sbr.rel (0) target = $region9
    $region8: #{tpu_custom_call.1} parent=1 // pred_region
      _
    $region9: #{tpu_custom_call.1} parent=1 // pred_fallthru
      _
    // Predicated region
    $region10: #{tpu_custom_call.1} parent=1 // pred_check
      _
    $region11: #{tpu_custom_call.1} parent=1 // pred_check_branch
      %27 = sbr.rel (0) target = $region13
    $region12: #{tpu_custom_call.1} parent=1 // pred_region
      _
    $region13: #{tpu_custom_call.1} parent=1 // pred_fallthru
      _
    // Predicated region
    $region14: #{tpu_custom_call.1} parent=1 // pred_check
      _
    $region15: #{tpu_custom_call.1} parent=1 // pred_check_branch
      %29 = sbr.rel (0) target = $region17
    $region16: #{tpu_custom_call.1} parent=1 // pred_region
      %30 = dma.done [#allocation3], 16
    $region17: #{tpu_custom_call.1} parent=1 // pred_fallthru
      _
    %p31 = scmp.eq.s32.totalorder 0, 0
    // Predicated region
    $region18: #{tpu_custom_call.1} parent=1 // pred_check
      %p32 = pneg %p31
    $region19: #{tpu_custom_call.1} parent=1 // pred_check_branch
      %34 = sbr.rel (%p32) target = $region21
    $region20: #{tpu_custom_call.1} parent=1 // pred_region
      %v35 = vld [vmem:[%s2] sm:$0x3]
      %v36 = vsub.f32 0.0, %v35
      %v37 = vmul.f32 %v36, 1.442695
      %v38 = vpow.pop %v37
      %v39 = vadd.f32 %v38, 1.0
      %v40 = vrcp.pop %v39
      %v41 = vmul.f32 1.0, %v40
      %vm42 = vcmask 25600
      %v43 = vsel %vm42, %v41, 0.0
      %44 = vadd.xlane.f32.xlu0 %v43
      %v45 = vpop.xlane.xlu0 %44
      %v46 = vmax.f32 %v45, 1.0
      %v47 = vrcp.pop %v46
      %v48 = vmul.f32 %v41, %v47
      %49 = vst.msk [vmem:[#allocation8] sm:$0x3] %vm42, %v48
    $region21: #{tpu_custom_call.1} parent=1 // pred_fallthru
      _
    %v50 = vld [vmem:[#allocation2] sm:$0x1]
    %v51 = vld [vmem:[%s1] sm:$0x1]
    %v52 = vmul.f32 %v50, %v50
    %v53 = vmul.f32 %v51, %v51
    %v54 = vadd.f32 %v52, %v53
    %v55 = vrsqrt.pop %v54
    %v56 = vmul.f32 %v54, %v55
    %vm57 = vcmp.eq.f32.partialorder %v54, inf
    %v58 = vsel %vm57, %v54, %v56
    %vm59 = vcmp.eq.f32.partialorder %v54, 0.0
    %v60 = vand.u32 %v54, 2147483648
    %v61 = vsel %vm59, %v60, %v58
    %v62 = vrcp.pop %v61
    %v63 = vmul.f32 1.0, %v62
    %v64 = vmul.f32 %v50, %v63
    %v65 = vmul.f32 %v64, 0.25
    %v66 = vmul.f32 %v51, %v63
    %v67 = vmul.f32 %v66, 0.25
    %v68 = vmul.f32 %v65, %v65
    %v69 = vmul.f32 %v67, %v67
    %v70 = vadd.f32 %v68, %v69
    %v71 = vrsqrt.pop %v70
    %v72 = vmul.f32 %v70, %v71
    %vm73 = vcmp.eq.f32.partialorder %v70, inf
    %v74 = vsel %vm73, %v70, %v72
    %vm75 = vcmp.eq.f32.partialorder %v70, 0.0
    %v76 = vand.u32 %v70, 2147483648
    %v77 = vsel %vm75, %v76, %v74
    %v78 = vmul.f32 %v67, 0.0
    %v79 = vadd.f32 %v65, %v78
    %v80 = vmul.f32 %v65, 0.9238795
    %v81 = vmul.f32 %v67, 0.38268343
    %v82 = vadd.f32 %v80, %v81
    %vm83 = vcmp.gt.f32.partialorder %v82, %v79
    %v84 = vsel %vm83, %v82, %v79
    %v85 = vsel %vm83, 0.9238795, 1.0
    %v86 = vsel %vm83, 0.38268343, 0.0
    %v87 = vmul.f32 %v65, 0.70710677
    %v88 = vmul.f32 %v67, 0.70710677
    %v89 = vadd.f32 %v87, %v88
    %vm90 = vcmp.gt.f32.partialorder %v89, %v84
    %v91 = vsel %vm90, %v89, %v84
    %v92 = vsel %vm90, 0.70710677, %v85
    %v93 = vsel %vm90, 0.70710677, %v86
    %v94 = vmul.f32 %v65, 0.38268343
    %v95 = vmul.f32 %v67, 0.9238795
    %v96 = vadd.f32 %v94, %v95
    %vm97 = vcmp.gt.f32.partialorder %v96, %v91
    %v98 = vsel %vm97, %v96, %v91
    %v99 = vsel %vm97, 0.38268343, %v92
    %v100 = vsel %vm97, 0.9238795, %v93
    %v101 = vmul.f32 %v65, 6.123234e-17
    %v102 = vadd.f32 %v101, %v67
    %vm103 = vcmp.gt.f32.partialorder %v102, %v98
    %v104 = vsel %vm103, %v102, %v98
    %v105 = vsel %vm103, 6.123234e-17, %v99
    %v106 = vsel %vm103, 1.0, %v100
    %v107 = vmul.f32 %v65, -0.38268343
    %v108 = vadd.f32 %v107, %v95
    %vm109 = vcmp.gt.f32.partialorder %v108, %v104
    %v110 = vsel %vm109, %v108, %v104
    %v111 = vsel %vm109, -0.38268343, %v105
    %v112 = vsel %vm109, 0.9238795, %v106
    %v113 = vmul.f32 %v65, -0.70710677
    %v114 = vadd.f32 %v113, %v88
    %vm115 = vcmp.gt.f32.partialorder %v114, %v110
    %v116 = vsel %vm115, %v114, %v110
    %v117 = vsel %vm115, -0.70710677, %v111
    %v118 = vsel %vm115, 0.70710677, %v112
    %v119 = vmul.f32 %v65, -0.9238795
    %v120 = vadd.f32 %v119, %v81
    %vm121 = vcmp.gt.f32.partialorder %v120, %v116
    %v122 = vsel %vm121, %v120, %v116
    %v123 = vsel %vm121, -0.9238795, %v117
    %v124 = vsel %vm121, 0.38268343, %v118
    %v125 = vmul.f32 %v65, -1.0
    %v126 = vmul.f32 %v67, 1.2246469e-16
    %v127 = vadd.f32 %v125, %v126
    %vm128 = vcmp.gt.f32.partialorder %v127, %v122
    %v129 = vsel %vm128, %v127, %v122
    %v130 = vsel %vm128, -1.0, %v123
    %v131 = vsel %vm128, 1.2246469e-16, %v124
    %v132 = vmul.f32 %v67, -0.38268343
    %v133 = vadd.f32 %v119, %v132
    %vm134 = vcmp.gt.f32.partialorder %v133, %v129
    %v135 = vsel %vm134, %v133, %v129
    %v136 = vsel %vm134, -0.9238795, %v130
    %v137 = vsel %vm134, -0.38268343, %v131
    %v138 = vmul.f32 %v67, -0.70710677
    %v139 = vadd.f32 %v113, %v138
    %vm140 = vcmp.gt.f32.partialorder %v139, %v135
    %v141 = vsel %vm140, %v139, %v135
    %v142 = vsel %vm140, -0.70710677, %v136
    %v143 = vsel %vm140, -0.70710677, %v137
    %v144 = vmul.f32 %v67, -0.9238795
    %v145 = vadd.f32 %v107, %v144
    %vm146 = vcmp.gt.f32.partialorder %v145, %v141
    %v147 = vsel %vm146, %v145, %v141
    %v148 = vsel %vm146, -0.38268343, %v142
    %v149 = vsel %vm146, -0.9238795, %v143
    %v150 = vmul.f32 %v65, -1.8369701e-16
    %v151 = vmul.f32 %v67, -1.0
    %v152 = vadd.f32 %v150, %v151
    %vm153 = vcmp.gt.f32.partialorder %v152, %v147
    %v154 = vsel %vm153, %v152, %v147
    %v155 = vsel %vm153, -1.8369701e-16, %v148
    %v156 = vsel %vm153, -1.0, %v149
    %v157 = vadd.f32 %v94, %v144
    %vm158 = vcmp.gt.f32.partialorder %v157, %v154
    %v159 = vsel %vm158, %v157, %v154
    %v160 = vsel %vm158, 0.38268343, %v155
    %v161 = vsel %vm158, -0.9238795, %v156
    %v162 = vadd.f32 %v87, %v138
    %vm163 = vcmp.gt.f32.partialorder %v162, %v159
    %v164 = vsel %vm163, %v162, %v159
    %v165 = vsel %vm163, 0.70710677, %v160
    %v166 = vsel %vm163, -0.70710677, %v161
    %v167 = vadd.f32 %v80, %v132
    %vm168 = vcmp.gt.f32.partialorder %v167, %v164
    %v169 = vsel %vm168, 0.9238795, %v165
    %v170 = vsel %vm168, -0.38268343, %v166
    %v171 = vmul.f32 %v77, %v169
    %172 = vst [vmem:[#allocation5] sm:$0x1] %v171
    %v173 = vmul.f32 %v77, %v170
    %174 = vst [vmem:[#allocation6] sm:$0x1] %v173
    // Predicated region
    $region22: #{tpu_custom_call.1} parent=1 // pred_check
      _
    $region23: #{tpu_custom_call.1} parent=1 // pred_check_branch
      %176 = sbr.rel (0) target = $region25
    $region24: #{tpu_custom_call.1} parent=1 // pred_region
      %s178 = ssub.s32 16, 16
      %179 = vsyncadd [#allocation4], %s178
      %s181 = sshll.u32 [#allocation5], 4
      %s182 = int_to_ptr.vmem [resolvable:$true] %s181
      %184 = dma.vmem_to_hbm [thread:$0]  %s182, 16, %s3, [#allocation4]
    $region25: #{tpu_custom_call.1} parent=1 // pred_fallthru
      _
    // Predicated region
    $region26: #{tpu_custom_call.1} parent=1 // pred_check
      _
    $region27: #{tpu_custom_call.1} parent=1 // pred_check_branch
      %186 = sbr.rel (0) target = $region29
    $region28: #{tpu_custom_call.1} parent=1 // pred_region
      %s188 = ssub.s32 16, 16
      %189 = vsyncadd [#allocation7], %s188
      %s191 = sshll.u32 [#allocation6], 4
      %s192 = int_to_ptr.vmem [resolvable:$true] %s191
      %194 = dma.vmem_to_hbm [thread:$0]  %s192, 16, %s4, [#allocation7]
    $region29: #{tpu_custom_call.1} parent=1 // pred_fallthru
      _
    // Predicated region
    $region30: #{tpu_custom_call.1} parent=1 // pred_check
      _
    $region31: #{tpu_custom_call.1} parent=1 // pred_check_branch
      %196 = sbr.rel (0) target = $region33
    $region32: #{tpu_custom_call.1} parent=1 // pred_region
      %s198 = ssub.s32 32, 32
      %199 = vsyncadd [#allocation7], %s198
      %s201 = sshll.u32 [#allocation8], 4
      %s202 = int_to_ptr.vmem [resolvable:$true] %s201
      %204 = dma.vmem_to_hbm [thread:$0]  %s202, 32, %s5, [#allocation7]
    $region33: #{tpu_custom_call.1} parent=1 // pred_fallthru
      _
    // Predicated region
    $region34: #{tpu_custom_call.1} parent=1 // pred_check
      _
    $region35: #{tpu_custom_call.1} parent=1 // pred_check_branch
      %206 = sbr.rel (0) target = $region37
    $region36: #{tpu_custom_call.1} parent=1 // pred_region
      %207 = dma.done [#allocation4], 16
    $region37: #{tpu_custom_call.1} parent=1 // pred_fallthru
      _
    // Predicated region
    $region38: #{tpu_custom_call.1} parent=1 // pred_check
      _
    $region39: #{tpu_custom_call.1} parent=1 // pred_check_branch
      %209 = sbr.rel (0) target = $region41
    $region40: #{tpu_custom_call.1} parent=1 // pred_region
      %210 = dma.done [#allocation7], 16
    $region41: #{tpu_custom_call.1} parent=1 // pred_fallthru
      _
    // Predicated region
    $region42: #{tpu_custom_call.1} parent=1 // pred_check
      _
    $region43: #{tpu_custom_call.1} parent=1 // pred_check_branch
      %212 = sbr.rel (0) target = $region45
    $region44: #{tpu_custom_call.1} parent=1 // pred_region
      %213 = dma.done [#allocation7], 32
    $region45: #{tpu_custom_call.1} parent=1 // pred_fallthru
      _
    %214 = vsyncpa [#allocation3], 1
    %215 = vsyncpa [#allocation4], 1
    %216 = vsyncpa [#allocation7], 1

</llo_original>
